<compile_context>
chip_gen: v5e
topology: v5e:2x2
jax: 0.10.0
libtpu: 0.0.40
codegen_flags: <defaults>
</compile_context>

<pallas_src>
import functools

import jax
import jax.numpy as jnp
from jax.experimental import pallas as pl
from jax.experimental.pallas import tpu as pltpu

LN_EPS = 1e-5
ROW_ALIGN = 16      # bf16 sublane packing (also fine for f32)
LANE = 128


def _round_up(x, m):
    return (x + m - 1) // m * m


# ---------------------------------------------------------------------------
# Kernel: LayerNorm (normalize only; affine folded into W) -> Linear -> LN2
# ---------------------------------------------------------------------------
def patch_embed_kernel(x_ref, w_ref, bw_ref, g2_ref, b2_ref, o_ref):
    # x_ref: (tm, F) bf16 token tile. All LN math in f32.
    x = x_ref[...].astype(jnp.float32)

    # LayerNorm(in_feats): two-pass (mean, then centered sum of squares) for
    # torch.nn.LayerNorm parity. gamma/beta were folded into w_ref/bw_ref.
    mu = jnp.mean(x, axis=-1, keepdims=True)
    xc = x - mu
    var = jnp.mean(xc * xc, axis=-1, keepdims=True)
    xn = xc * jax.lax.rsqrt(var + LN_EPS)

    # Linear(in_feats -> embed_dim), LN1 affine folded in:
    # bf16 operands on the MXU, f32 accumulator, f32 bias.
    y = jnp.dot(xn.astype(w_ref.dtype), w_ref[...],
                preferred_element_type=jnp.float32) + bw_ref[...]

    # Dropout(p=0.1): identity in eval mode.
    # TODO(synk): training-mode dropout (pltpu.prng_random_bits mask) not wired in.

    # LayerNorm(embed_dim)
    mu2 = jnp.mean(y, axis=-1, keepdims=True)
    yc = y - mu2
    var2 = jnp.mean(yc * yc, axis=-1, keepdims=True)
    yn = yc * jax.lax.rsqrt(var2 + LN_EPS) * g2_ref[...] + b2_ref[...]

    o_ref[...] = yn.astype(o_ref.dtype)


# ---------------------------------------------------------------------------
# Glue: patchify + parameter permutation / folding + tile sizing
# ---------------------------------------------------------------------------
def patchify(x, patch_size):
    """'b c (h p1) (w p2) -> b (h w) (c p1 p2)'  (channel-major features).

    Channel-major order makes the innermost output axis contiguous length-p
    runs of the source instead of the C=3-strided gathers implied by the
    original (p1 p2 c) order. LayerNorm/Linear are permutation-invariant once
    their params are permuted to match, so the module output is unchanged.
    """
    B, C, H, W = x.shape
    p = patch_size
    h, w = H // p, W // p
    x = x.reshape(B, C, h, p, w, p)            # b c h p1 w p2
    x = jnp.transpose(x, (0, 2, 4, 1, 3, 5))   # b h w c p1 p2
    return x.reshape(B, h * w, C * p * p)


def _perm_to_channel_major(a, patch_size, channels, axis=0):
    """Permute a feature axis indexed as (p1 p2 c) to (c p1 p2) order."""
    p, C = patch_size, channels
    a = jnp.moveaxis(a, axis, 0)
    rest = a.shape[1:]
    a = a.reshape(p, p, C, *rest)
    a = jnp.transpose(a, (2, 0, 1) + tuple(range(3, a.ndim)))
    a = a.reshape(p * p * C, *rest)
    return jnp.moveaxis(a, 0, axis)


def _choose_tile(N, tm_cap):
    """Pick a token tile: multiple of 16, <= tm_cap, exactly dividing N when a
    reasonable divisor exists (avoids the jnp.pad / out[:N] HBM passes), and
    leaving >= 2 grid steps when N allows (v7x has 2 TensorCores)."""
    limit = max(ROW_ALIGN, min(tm_cap, _round_up(N, ROW_ALIGN)))
    if N >= 2 * ROW_ALIGN:
        limit = min(limit, max(ROW_ALIGN, (N // 2) // ROW_ALIGN * ROW_ALIGN))
    if N % ROW_ALIGN == 0:
        best = 0
        cand = limit - limit % ROW_ALIGN
        while cand >= ROW_ALIGN:
            if N % cand == 0:
                best = cand
                break
            cand -= ROW_ALIGN
        # Accept the exact divisor unless it would shrink tiles far below the cap.
        if best and (best >= limit // 2 or best == N):
            return best, N
    return limit, _round_up(N, limit)


@functools.partial(jax.jit, static_argnames=("patch_size", "tm", "compute_dtype"))
def patch_embedding(x, params, *, patch_size, tm=4096, compute_dtype=jnp.bfloat16):
    g1, b1, w, bw, g2, b2 = params
    f32 = jnp.float32
    _, C, _, _ = x.shape
    p = patch_size

    # Cast BEFORE patchify so the (unavoidable) transpose materializes bf16-wide.
    tokens = patchify(x.astype(compute_dtype), p)             # (B, P, F) channel-major feats
    Bn, P, F = tokens.shape
    E = w.shape[1]
    N = Bn * P
    flat = tokens.reshape(N, F)                                # contiguous, free

    # --- parameter prep (trace-time) -----------------------------------------
    # Permute F-indexed params to channel-major feature order, then fold LN1's
    # affine into the linear layer:  W' = diag(g1) @ W,  b' = b1 @ W + bw.
    g1p = _perm_to_channel_major(g1.astype(f32), p, C, axis=0)
    b1p = _perm_to_channel_major(b1.astype(f32), p, C, axis=0)
    wp = _perm_to_channel_major(w.astype(f32), p, C, axis=0)
    w_fold = (g1p[:, None] * wp).astype(compute_dtype)         # (F, E) bf16
    b_fold = (b1p @ wp + bw.astype(f32)).reshape(1, E)         # (1, E) f32
    g2r = g2.astype(f32).reshape(1, E)
    b2r = b2.astype(f32).reshape(1, E)

    # --- tile sizing against VMEM (v7x: 64 MiB physical) ---------------------
    itm = jnp.dtype(compute_dtype).itemsize
    f_pad = _round_up(F, LANE)
    e_pad = _round_up(E, LANE)
    # Per token row: double-buffered bf16 in/out tiles + ~2 lane-padded f32
    # in-kernel intermediates at each width (x/xn and y/yn).
    per_row = 2 * f_pad * itm + 2 * e_pad * itm + 2 * 4 * (f_pad + e_pad)
    param_bytes = f_pad * e_pad * itm + 3 * e_pad * 4
    budget = (40 << 20) - param_bytes                          # keep well under 64 MiB
    tm_cap = max(ROW_ALIGN, min(tm, budget // per_row // ROW_ALIGN * ROW_ALIGN))
    tm_eff, n_pad = _choose_tile(N, tm_cap)
    if n_pad != N:
        # Fallback only for awkward N; padded rows are benign (var clamped by
        # eps) and sliced off below.
        flat = jnp.pad(flat, ((0, n_pad - N), (0, 0)))

    vmem_est = tm_eff * per_row + param_bytes + (8 << 20)      # + headroom
    vmem_limit = int(min(vmem_est, 64 << 20))

    full = lambda i: (0, 0)
    out = pl.pallas_call(
        patch_embed_kernel,
        out_shape=jax.ShapeDtypeStruct((n_pad, E), compute_dtype),
        grid_spec=pltpu.PrefetchScalarGridSpec(
            num_scalar_prefetch=0,
            grid=(n_pad // tm_eff,),
            in_specs=[
                pl.BlockSpec((tm_eff, F), lambda i: (i, 0)),   # token tile
                pl.BlockSpec((F, E), full),                    # folded linear weight
                pl.BlockSpec((1, E), full),                    # folded linear bias (f32)
                pl.BlockSpec((1, E), full),                    # LN2 gamma
                pl.BlockSpec((1, E), full),                    # LN2 beta
            ],
            out_specs=pl.BlockSpec((tm_eff, E), lambda i: (i, 0)),
        ),
        compiler_params=pltpu.CompilerParams(
            dimension_semantics=("parallel",),   # token axis shards across v7x TCs
            vmem_limit_bytes=vmem_limit,
        ),
    )(flat, w_fold, b_fold, g2r, b2r)

    if n_pad != N:
        out = out[:N]
    return out.reshape(Bn, P, E)


# ---------------------------------------------------------------------------
# Pure-JAX reference: original (p1 p2 c) feature order, no folding.
# ---------------------------------------------------------------------------
def reference(x, params, patch_size, compute_dtype=jnp.bfloat16):
    """Same math as the PyTorch module (eval-mode dropout), same precision
    recipe as the kernel (bf16 tokens / matmul operands, f32 LN + accumulator),
    but with the original feature ordering and unfused LN1 — so it validates
    both the channel-major permutation and the LN1 fold."""
    g1, b1, w, bw, g2, b2 = params
    f32 = jnp.float32
    B, C, H, W = x.shape
    p = patch_size
    h, wd = H // p, W // p
    t = x.astype(compute_dtype).astype(f32)
    t = t.reshape(B, C, h, p, wd, p)
    t = jnp.transpose(t, (0, 2, 4, 3, 5, 1)).reshape(B, h * wd, p * p * C)

    def ln(v, g, b):
        mu = jnp.mean(v, axis=-1, keepdims=True)
        vc = v - mu
        var = jnp.mean(vc * vc, axis=-1, keepdims=True)
        return vc * jax.lax.rsqrt(var + LN_EPS) * g + b

    t = ln(t, g1.astype(f32), b1.astype(f32))
    t = jnp.dot(t.astype(compute_dtype), w.astype(compute_dtype),
                preferred_element_type=f32) + bw.astype(f32)
    return ln(t, g2.astype(f32), b2.astype(f32))


if __name__ == "__main__":
    patch_size = 4
    embed_dim = 128                      # multiple of 128 -> lane-dense output
    B, C, H, W = 2, 3, 16, 16            # NCHW; module fixes channels = 3
    in_feats = patch_size ** 2 * C       # 48

    key = jax.random.PRNGKey(0)
    kx, kg1, kb1, kw, kbw, kg2, kb2 = jax.random.split(key, 7)

    x = jax.random.normal(kx, (B, C, H, W), dtype=jnp.float32)
    params = (
        1.0 + 0.1 * jax.random.normal(kg1, (in_feats,), jnp.float32),    # LN1 gamma
        0.1 * jax.random.normal(kb1, (in_feats,), jnp.float32),          # LN1 beta
        jax.random.normal(kw, (in_feats, embed_dim), jnp.float32)
        / jnp.sqrt(float(in_feats)),                                     # Linear W
        0.1 * jax.random.normal(kbw, (embed_dim,), jnp.float32),         # Linear b
        1.0 + 0.1 * jax.random.normal(kg2, (embed_dim,), jnp.float32),   # LN2 gamma
        0.1 * jax.random.normal(kb2, (embed_dim,), jnp.float32),         # LN2 beta
    )

    out = patch_embedding(x, params, patch_size=patch_size)
    out = jax.block_until_ready(out)

    ref = reference(x, params, patch_size)
    n_patches = (H // patch_size) * (W // patch_size)
    assert out.shape == (B, n_patches, embed_dim)
    # bf16 I/O + LN1-affine fold (extra bf16 rounding path) -> slightly looser
    # tolerance than a pure-f32 end-to-end run.
    assert jnp.allclose(out.astype(jnp.float32), ref, atol=3e-2, rtol=3e-2), \
        "mismatch vs reference"

    print("KERNEL_OK")
</pallas_src>

<mosaic_0001>
module attributes {stable_mosaic.version = 11 : i64} {
  func.func @patch_embed_kernel(%arg0: i32, %arg1: memref<16x48xbf16, #tpu.memory_space<vmem>>, %arg2: memref<48x128xbf16, #tpu.memory_space<vmem>>, %arg3: memref<1x128xf32, #tpu.memory_space<vmem>>, %arg4: memref<1x128xf32, #tpu.memory_space<vmem>>, %arg5: memref<1x128xf32, #tpu.memory_space<vmem>>, %arg6: memref<16x128xbf16, #tpu.memory_space<vmem>>) attributes {dimension_semantics = [#tpu.dimension_semantics<parallel>], iteration_bounds = array<i64: 2>, scalar_prefetch = 0 : i64, scratch_operands = 0 : i64, tpu.core_type = #tpu.core_type<tc>, window_params = [{transform_indices = @transform_0, window_bounds = array<i64: 16, 48>}, {pipeline_mode = #tpu.pipeline_mode<synchronous>, transform_indices = @transform_1, window_bounds = array<i64: 48, 128>}, {pipeline_mode = #tpu.pipeline_mode<synchronous>, transform_indices = @transform_2, window_bounds = array<i64: 1, 128>}, {pipeline_mode = #tpu.pipeline_mode<synchronous>, transform_indices = @transform_3, window_bounds = array<i64: 1, 128>}, {pipeline_mode = #tpu.pipeline_mode<synchronous>, transform_indices = @transform_4, window_bounds = array<i64: 1, 128>}, {transform_indices = @transform_5, window_bounds = array<i64: 16, 128>}]} {
    %c0 = arith.constant 0 : index
    %c0_0 = arith.constant 0 : index
    %0 = vector.load %arg1[%c0, %c0_0] : memref<16x48xbf16, #tpu.memory_space<vmem>>, vector<16x48xbf16>
    %1 = arith.extf %0 : vector<16x48xbf16> to vector<16x48xf32>
    %cst = arith.constant dense<0.000000e+00> : vector<16xf32>
    %2 = vector.multi_reduction <add>, %1, %cst [1] : vector<16x48xf32> to vector<16xf32>
    %3 = vector.shape_cast %2 : vector<16xf32> to vector<16x1xf32>
    %cst_1 = arith.constant 4.800000e+01 : f32
    %4 = vector.broadcast %cst_1 : f32 to vector<16x1xf32>
    %5 = arith.divf %3, %4 : vector<16x1xf32>
    %6 = vector.broadcast %5 : vector<16x1xf32> to vector<16x48xf32>
    %7 = arith.subf %1, %6 : vector<16x48xf32>
    %8 = arith.mulf %7, %7 : vector<16x48xf32>
    %cst_2 = arith.constant dense<0.000000e+00> : vector<16xf32>
    %9 = vector.multi_reduction <add>, %8, %cst_2 [1] : vector<16x48xf32> to vector<16xf32>
    %10 = vector.shape_cast %9 : vector<16xf32> to vector<16x1xf32>
    %cst_3 = arith.constant 4.800000e+01 : f32
    %11 = vector.broadcast %cst_3 : f32 to vector<16x1xf32>
    %12 = arith.divf %10, %11 : vector<16x1xf32>
    %cst_4 = arith.constant 9.99999974E-6 : f32
    %13 = vector.broadcast %cst_4 : f32 to vector<16x1xf32>
    %14 = arith.addf %12, %13 : vector<16x1xf32>
    %15 = math.rsqrt %14 : vector<16x1xf32>
    %16 = vector.broadcast %15 : vector<16x1xf32> to vector<16x48xf32>
    %17 = arith.mulf %7, %16 : vector<16x48xf32>
    %18 = arith.truncf %17 : vector<16x48xf32> to vector<16x48xbf16>
    %c0_5 = arith.constant 0 : index
    %c0_6 = arith.constant 0 : index
    %19 = vector.load %arg2[%c0_5, %c0_6] : memref<48x128xbf16, #tpu.memory_space<vmem>>, vector<48x128xbf16>
    %cst_7 = arith.constant dense<0.000000e+00> : vector<16x128xf32>
    %20 = tpu.matmul %18, %19, %cst_7 {dimension_numbers = #tpu.dot_dimension_numbers<[1], [0], [0], [1], [0, 0, 1, 1], [], []>} : vector<16x48xbf16>, vector<48x128xbf16>, vector<16x128xf32> -> vector<16x128xf32>
    %c0_8 = arith.constant 0 : index
    %c0_9 = arith.constant 0 : index
    %21 = vector.load %arg3[%c0_8, %c0_9] : memref<1x128xf32, #tpu.memory_space<vmem>>, vector<1x128xf32>
    %22 = vector.broadcast %21 : vector<1x128xf32> to vector<16x128xf32>
    %23 = arith.addf %20, %22 : vector<16x128xf32>
    %cst_10 = arith.constant dense<0.000000e+00> : vector<16xf32>
    %24 = vector.multi_reduction <add>, %23, %cst_10 [1] : vector<16x128xf32> to vector<16xf32>
    %25 = vector.shape_cast %24 : vector<16xf32> to vector<16x1xf32>
    %cst_11 = arith.constant 1.280000e+02 : f32
    %26 = vector.broadcast %cst_11 : f32 to vector<16x1xf32>
    %27 = arith.divf %25, %26 : vector<16x1xf32>
    %28 = vector.broadcast %27 : vector<16x1xf32> to vector<16x128xf32>
    %29 = arith.subf %23, %28 : vector<16x128xf32>
    %30 = arith.mulf %29, %29 : vector<16x128xf32>
    %cst_12 = arith.constant dense<0.000000e+00> : vector<16xf32>
    %31 = vector.multi_reduction <add>, %30, %cst_12 [1] : vector<16x128xf32> to vector<16xf32>
    %32 = vector.shape_cast %31 : vector<16xf32> to vector<16x1xf32>
    %cst_13 = arith.constant 1.280000e+02 : f32
    %33 = vector.broadcast %cst_13 : f32 to vector<16x1xf32>
    %34 = arith.divf %32, %33 : vector<16x1xf32>
    %cst_14 = arith.constant 9.99999974E-6 : f32
    %35 = vector.broadcast %cst_14 : f32 to vector<16x1xf32>
    %36 = arith.addf %34, %35 : vector<16x1xf32>
    %37 = math.rsqrt %36 : vector<16x1xf32>
    %38 = vector.broadcast %37 : vector<16x1xf32> to vector<16x128xf32>
    %39 = arith.mulf %29, %38 : vector<16x128xf32>
    %c0_15 = arith.constant 0 : index
    %c0_16 = arith.constant 0 : index
    %40 = vector.load %arg4[%c0_15, %c0_16] : memref<1x128xf32, #tpu.memory_space<vmem>>, vector<1x128xf32>
    %41 = vector.broadcast %40 : vector<1x128xf32> to vector<16x128xf32>
    %42 = arith.mulf %39, %41 : vector<16x128xf32>
    %c0_17 = arith.constant 0 : index
    %c0_18 = arith.constant 0 : index
    %43 = vector.load %arg5[%c0_17, %c0_18] : memref<1x128xf32, #tpu.memory_space<vmem>>, vector<1x128xf32>
    %44 = vector.broadcast %43 : vector<1x128xf32> to vector<16x128xf32>
    %45 = arith.addf %42, %44 : vector<16x128xf32>
    %46 = arith.truncf %45 : vector<16x128xf32> to vector<16x128xbf16>
    %c0_19 = arith.constant 0 : index
    %c0_20 = arith.constant 0 : index
    %47 = vector.load %arg6[%c0_19, %c0_20] : memref<16x128xbf16, #tpu.memory_space<vmem>>, vector<16x128xbf16>
    tpu.vector_store %arg6[%c0_19, %c0_20], %46 {strides = array<i32>} : memref<16x128xbf16, #tpu.memory_space<vmem>>, vector<16x128xbf16>,
    return
  }
  func.func @transform_0(%arg0: i32) -> (i32, i32) {
    %c0_i32 = arith.constant 0 : i32
    %c0_i32_0 = arith.constant 0 : i32
    return %arg0, %c0_i32 : i32, i32
  }
  func.func @transform_1(%arg0: i32) -> (i32, i32) {
    %c0_i32 = arith.constant 0 : i32
    %c0_i32_0 = arith.constant 0 : i32
    %c0_i32_1 = arith.constant 0 : i32
    return %c0_i32, %c0_i32_0 : i32, i32
  }
  func.func @transform_2(%arg0: i32) -> (i32, i32) {
    %c0_i32 = arith.constant 0 : i32
    %c0_i32_0 = arith.constant 0 : i32
    %c0_i32_1 = arith.constant 0 : i32
    return %c0_i32, %c0_i32_0 : i32, i32
  }
  func.func @transform_3(%arg0: i32) -> (i32, i32) {
    %c0_i32 = arith.constant 0 : i32
    %c0_i32_0 = arith.constant 0 : i32
    %c0_i32_1 = arith.constant 0 : i32
    return %c0_i32, %c0_i32_0 : i32, i32
  }
  func.func @transform_4(%arg0: i32) -> (i32, i32) {
    %c0_i32 = arith.constant 0 : i32
    %c0_i32_0 = arith.constant 0 : i32
    %c0_i32_1 = arith.constant 0 : i32
    return %c0_i32, %c0_i32_0 : i32, i32
  }
  func.func @transform_5(%arg0: i32) -> (i32, i32) {
    %c0_i32 = arith.constant 0 : i32
    %c0_i32_0 = arith.constant 0 : i32
    return %arg0, %c0_i32 : i32, i32
  }
}

</mosaic_0001>

<llo_original>
// kernel: patch_embedding.1
$region0: #{patch_embedding.1}
  #allocation0 [shape = 'u32[]', space=smem, size = 0x4, offset = 0x4, fixed_abs, tag = 'smem constant byte address 0x4 - core index']
  #allocation1 [shape = 'u32[72,128]{1,0:T(1,128)}', space=vmem, size = 0x9000, scoped, tag = 'internal scratch']
  %s0 = inlined_call_operand.vmem [shape: bf16[32,48], index: 0, kind: input, shape index: {}]
  %s1 = inlined_call_operand.vmem [shape: bf16[48,128], index: 1, kind: input, shape index: {}]
  %s2 = inlined_call_operand.vmem [shape: f32[1,128], index: 2, kind: input, shape index: {}]
  %s3 = inlined_call_operand.vmem [shape: f32[1,128], index: 3, kind: input, shape index: {}]
  %s4 = inlined_call_operand.vmem [shape: f32[1,128], index: 4, kind: input, shape index: {}]
  %s5 = inlined_call_operand.hbm [shape: bf16[32,128], index: 5, kind: output, shape index: {}]
  %s6 = sld [smem:[#allocation0]]
  $region53: #{patch_embedding.1} parent=0
    _
  %s8 = ssub.s32 1, %s6
  %s9 = scalar_select 0, %s8, %s6
  $region1: #{patch_embedding.1} parent=0
    #allocation2 [shape = 'u8[8192]{0}', space=vmem, size = 0x2000, scoped, tag = 'output window, operand 0']
    #allocation3 [shape = 's32[2]{0}', space=sflag, size = 0x8, scoped, tag = 'scoped memory for patch_embedding.1']
    %10 = vsyncpa [#allocation3], 0
    %s11 = scalar_lea.sflag [#allocation3], 1
    %12 = vsyncpa %s11, 0
    loop: start=0, step=1, limit=4
    $region2: #{patch_embedding.1} parent=1 // loop_pre_header
      _
    $region3: #{patch_embedding.1} parent=1 // loop_header
      %s14 = sphi 0, %s18
      %p15 = scmp.ge.s32.totalorder %s14, 4
      %s24 = sphi 0, %s26
      %s27 = sphi 0, %s24
      %s28 = sphi 0, %s27
      %s44 = sphi 0, %s28
      %s48 = sphi 0, %s48
      %s50 = sphi 0, %s48
      %s51 = sphi 0, %s50
      %s65 = sphi 0, %s51
      %s69 = sphi 0, %s69
      %s71 = sphi 0, %s69
      %s72 = sphi 0, %s71
      %s86 = sphi 0, %s72
      %s90 = sphi 0, %s90
      %s92 = sphi 0, %s90
      %s93 = sphi 0, %s92
      %s107 = sphi 0, %s93
      %s111 = sphi 0, %s111
      %s113 = sphi 0, %s111
      %s114 = sphi 0, %s113
      %s128 = sphi 0, %s114
      %s134 = sphi 0, %s136
      %s137 = sphi 0, %s134
      %s138 = sphi 0, %s137
      %s154 = sphi 0, %s138
    $region4: #{patch_embedding.1} parent=1 // loop_header_branch
      %17 = sbr.rel (%p15) target = $region8
    $region5: #{patch_embedding.1} parent=1 // loop_body
      %s19 = ssub.s32 %s14, 1
      %s20 = ssub.s32 %s14, 2
      %s21 = sadd.s32 %s14, 1
      %s22 = ssub.s32 %s14, %s21
      %p23 = scmp.eq.s32.totalorder %s22, 0
      %s25 = sadd.s32 %s24, 1
      %s26 = scalar_select %p23, %s24, %s25
      %p29 = pneg %p23
      %p30 = scmp.eq.s32.totalorder %s14, 1
      %p31 = por %p29, %p30
      %p32 = scmp.ne.s32.totalorder %s24, %s27
      %p33 = scmp.eq.s32.totalorder %s14, 0
      %p34 = por %p32, %p33
      %p35 = scmp.ne.s32.totalorder %s24, %s27
      %p36 = scmp.eq.s32.totalorder %s19, 1
      %p37 = por %p35, %p36
      %p38 = scmp.ne.s32.totalorder %s27, %s28
      %p39 = scmp.eq.s32.totalorder %s19, 0
      %p40 = por %p38, %p39
      %p41 = scmp.ne.s32.totalorder %s27, %s28
      %p42 = scmp.eq.s32.totalorder %s20, 1
      %p43 = por %p41, %p42
      %p45 = scmp.ne.s32.totalorder %s28, %s44
      %p46 = scmp.eq.s32.totalorder %s20, 0
      %p47 = por %p45, %p46
      %s49 = sadd.s32 %s48, 1
      %p52 = scmp.eq.s32.totalorder %s14, 1
      %p53 = scmp.ne.s32.totalorder %s48, %s50
      %p54 = scmp.eq.s32.totalorder %s14, 0
      %p55 = por %p53, %p54
      %p56 = scmp.ne.s32.totalorder %s48, %s50
      %p57 = scmp.eq.s32.totalorder %s19, 1
      %p58 = por %p56, %p57
      %p59 = scmp.ne.s32.totalorder %s50, %s51
      %p60 = scmp.eq.s32.totalorder %s19, 0
      %p61 = por %p59, %p60
      %p62 = scmp.ne.s32.totalorder %s50, %s51
      %p63 = scmp.eq.s32.totalorder %s20, 1
      %p64 = por %p62, %p63
      %p66 = scmp.ne.s32.totalorder %s51, %s65
      %p67 = scmp.eq.s32.totalorder %s20, 0
      %p68 = por %p66, %p67
      %s70 = sadd.s32 %s69, 1
      %p73 = scmp.eq.s32.totalorder %s14, 1
      %p74 = scmp.ne.s32.totalorder %s69, %s71
      %p75 = scmp.eq.s32.totalorder %s14, 0
      %p76 = por %p74, %p75
      %p77 = scmp.ne.s32.totalorder %s69, %s71
      %p78 = scmp.eq.s32.totalorder %s19, 1
      %p79 = por %p77, %p78
      %p80 = scmp.ne.s32.totalorder %s71, %s72
      %p81 = scmp.eq.s32.totalorder %s19, 0
      %p82 = por %p80, %p81
      %p83 = scmp.ne.s32.totalorder %s71, %s72
      %p84 = scmp.eq.s32.totalorder %s20, 1
      %p85 = por %p83, %p84
      %p87 = scmp.ne.s32.totalorder %s72, %s86
      %p88 = scmp.eq.s32.totalorder %s20, 0
      %p89 = por %p87, %p88
      %s91 = sadd.s32 %s90, 1
      %p94 = scmp.eq.s32.totalorder %s14, 1
      %p95 = scmp.ne.s32.totalorder %s90, %s92
      %p96 = scmp.eq.s32.totalorder %s14, 0
      %p97 = por %p95, %p96
      %p98 = scmp.ne.s32.totalorder %s90, %s92
      %p99 = scmp.eq.s32.totalorder %s19, 1
      %p100 = por %p98, %p99
      %p101 = scmp.ne.s32.totalorder %s92, %s93
      %p102 = scmp.eq.s32.totalorder %s19, 0
      %p103 = por %p101, %p102
      %p104 = scmp.ne.s32.totalorder %s92, %s93
      %p105 = scmp.eq.s32.totalorder %s20, 1
      %p106 = por %p104, %p105
      %p108 = scmp.ne.s32.totalorder %s93, %s107
      %p109 = scmp.eq.s32.totalorder %s20, 0
      %p110 = por %p108, %p109
      %s112 = sadd.s32 %s111, 1
      %p115 = scmp.eq.s32.totalorder %s14, 1
      %p116 = scmp.ne.s32.totalorder %s111, %s113
      %p117 = scmp.eq.s32.totalorder %s14, 0
      %p118 = por %p116, %p117
      %p119 = scmp.ne.s32.totalorder %s111, %s113
      %p120 = scmp.eq.s32.totalorder %s19, 1
      %p121 = por %p119, %p120
      %p122 = scmp.ne.s32.totalorder %s113, %s114
      %p123 = scmp.eq.s32.totalorder %s19, 0
      %p124 = por %p122, %p123
      %p125 = scmp.ne.s32.totalorder %s113, %s114
      %p126 = scmp.eq.s32.totalorder %s20, 1
      %p127 = por %p125, %p126
      %p129 = scmp.ne.s32.totalorder %s114, %s128
      %p130 = scmp.eq.s32.totalorder %s20, 0
      %p131 = por %p129, %p130
      %s132 = ssub.s32 %s14, %s21
      %p133 = scmp.eq.s32.totalorder %s132, 0
      %s135 = sadd.s32 %s134, 1
      %s136 = scalar_select %p133, %s134, %s135
      %p139 = pneg %p133
      %p140 = scmp.eq.s32.totalorder %s14, 1
      %p141 = por %p139, %p140
      %p142 = scmp.ne.s32.totalorder %s134, %s137
      %p143 = scmp.eq.s32.totalorder %s14, 0
      %p144 = por %p142, %p143
      %p145 = scmp.ne.s32.totalorder %s134, %s137
      %p146 = scmp.eq.s32.totalorder %s19, 1
      %p147 = por %p145, %p146
      %p148 = scmp.ne.s32.totalorder %s137, %s138
      %p149 = scmp.eq.s32.totalorder %s19, 0
      %p150 = por %p148, %p149
      %p151 = scmp.ne.s32.totalorder %s137, %s138
      %p152 = scmp.eq.s32.totalorder %s20, 1
      %p153 = por %p151, %p152
      %p155 = scmp.ne.s32.totalorder %s138, %s154
      %p156 = scmp.eq.s32.totalorder %s20, 0
      %p157 = por %p155, %p156
      %p158 = scmp.le.s32.totalorder 1, %s14
      %p159 = scmp.lt.s32.totalorder %s14, 3
      %p160 = pnand %p158, %p159
      %p161 = pneg %p160
      // Predicated region
      $region9: #{patch_embedding.1} parent=5 // pred_check
        _
      $region10: #{patch_embedding.1} parent=5 // pred_check_branch
        %163 = sbr.rel (%p160) target = $region12
      $region11: #{patch_embedding.1} parent=5 // pred_region
        %s164 = ssub.s32 %s14, 1
        // Predicated region
        $region13: #{patch_embedding.1} parent=11 // pred_check
          %p165 = pneg %p61
        $region14: #{patch_embedding.1} parent=11 // pred_check_branch
          %167 = sbr.rel (%p165) target = $region16
        $region15: #{patch_embedding.1} parent=11 // pred_region
          _
        $region16: #{patch_embedding.1} parent=11 // pred_fallthru
          _
        // Predicated region
        $region17: #{patch_embedding.1} parent=11 // pred_check
          %p168 = pneg %p82
        $region18: #{patch_embedding.1} parent=11 // pred_check_branch
          %170 = sbr.rel (%p168) target = $region20
        $region19: #{patch_embedding.1} parent=11 // pred_region
          _
        $region20: #{patch_embedding.1} parent=11 // pred_fallthru
          _
        // Predicated region
        $region21: #{patch_embedding.1} parent=11 // pred_check
          %p171 = pneg %p103
        $region22: #{patch_embedding.1} parent=11 // pred_check_branch
          %173 = sbr.rel (%p171) target = $region24
        $region23: #{patch_embedding.1} parent=11 // pred_region
          _
        $region24: #{patch_embedding.1} parent=11 // pred_fallthru
          _
        // Predicated region
        $region25: #{patch_embedding.1} parent=11 // pred_check
          %p174 = pneg %p124
        $region26: #{patch_embedding.1} parent=11 // pred_check_branch
          %176 = sbr.rel (%p174) target = $region28
        $region27: #{patch_embedding.1} parent=11 // pred_region
          _
        $region28: #{patch_embedding.1} parent=11 // pred_fallthru
          _
      $region12: #{patch_embedding.1} parent=5 // pred_fallthru
        _
      %p177 = scmp.lt.s32.totalorder %s14, 2
      // Predicated region
      $region29: #{patch_embedding.1} parent=5 // pred_check
        %p178 = pneg %p177
      $region30: #{patch_embedding.1} parent=5 // pred_check_branch
        %180 = sbr.rel (%p178) target = $region32
      $region31: #{patch_embedding.1} parent=5 // pred_region
        // Predicated region
        $region33: #{patch_embedding.1} parent=31 // pred_check
          %p181 = pneg %p34
        $region34: #{patch_embedding.1} parent=31 // pred_check_branch
          %183 = sbr.rel (%p181) target = $region36
        $region35: #{patch_embedding.1} parent=31 // pred_region
          %s184 = smul.u32 2, %s14
          %p185 = scmp.lt.s32.totalorder %s184, 3
          %s186 = scalar_select %p185, %s184, 3
          %s187 = smul.addr %s186, 4
          %s188 = scalar_lea.vmem %s0, %s187
          %s189 = smul.u32 2, %s14
        $region36: #{patch_embedding.1} parent=31 // pred_fallthru
          _
      $region32: #{patch_embedding.1} parent=5 // pred_fallthru
        _
      %p190 = scmp.le.s32.totalorder 1, %s14
      %p191 = scmp.lt.s32.totalorder %s14, 3
      %p192 = pnand %p190, %p191
      %p193 = pneg %p192
      // Predicated region
      $region37: #{patch_embedding.1} parent=5 // pred_check
        _
      $region38: #{patch_embedding.1} parent=5 // pred_check_branch
        %195 = sbr.rel (%p192) target = $region40
      $region39: #{patch_embedding.1} parent=5 // pred_region
        %s196 = ssub.s32 %s14, 1
        %s197 = smul.u32 2, %s19
        %p198 = scmp.lt.s32.totalorder %s197, 3
        %s199 = scalar_select %p198, %s197, 3
        %s200 = smul.addr %s199, 4
        %s201 = scalar_lea.vmem %s0, %s200
        %p202 = pneg %p40
        %p203 = pneg %p37
        %p204 = pneg %p61
        %p205 = pneg %p58
        %p206 = pneg %p82
        %p207 = pneg %p79
        %p208 = pneg %p103
        %p209 = pneg %p100
        %p210 = pneg %p124
        %p211 = pneg %p121
        %p212 = pneg %p150
        %p213 = pneg %p147
        %s214 = sand.u32 %s137, 1
        %s215 = scalar_lea.sflag [#allocation3], %s214
        %s216 = sand.u32 %s137, 1
        %s217 = smul.addr %s216, 8
        %s218 = scalar_lea.vmem [#allocation2], %s217
        %s219 = smul.u32 2, %s19
        %p220 = scmp.lt.s32.totalorder %s219, 3
        %s221 = scalar_select %p220, %s219, 3
        %s222 = smul.addr %s221, 4
        %s223 = scalar_lea.vmem %s0, %s222
        %s224 = smul.u32 2, %s19
        %s225 = smul.u32 2, %s19
        %v227 = vld [vmem:[%s223] sm:$0xf]
        %v228 = vld [vmem:[%s223 + $0x4] sm:$0xf]
        %v229 = vunpack.c.l.bf16 %v227
        %v230 = vunpack.c.l.bf16 %v228
        %vm231 = vcmask 392192
        %v232 = vsel %vm231, %v229, 0.0
        %233 = vadd.xlane.f32.xlu0 %v232
        %v234 = vpop.xlane.xlu0 %233
        %v235 = vsel %vm231, %v230, 0.0
        %236 = vadd.xlane.f32.xlu0 %v235
        %v237 = vpop.xlane.xlu0 %236
        %v238 = vrcp.pop 48.0
        %v239 = vmul.f32 48.0, %v238
        %v240 = vsub.f32 1.0, %v239
        %v241 = vmul.f32 %v238, %v240
        %v242 = vadd.f32 %v238, %v241
        %vm243 = vweird.f32 %v238
        %v244 = vsel %vm243, %v238, %v242
        %v245 = vmul.f32 %v234, %v244
        %v246 = vmul.f32 %v237, %v244
        %v247 = vsub.f32 %v229, %v245
        %v248 = vsub.f32 %v230, %v246
        %v249 = vmul.f32 %v247, %v247
        %v250 = vmul.f32 %v248, %v248
        %v251 = vsel %vm231, %v249, 0.0
        %252 = vadd.xlane.f32.xlu0 %v251
        %v253 = vpop.xlane.xlu0 %252
        %v254 = vsel %vm231, %v250, 0.0
        %255 = vadd.xlane.f32.xlu0 %v254
        %v256 = vpop.xlane.xlu0 %255
        %v257 = vmul.f32 %v253, %v244
        %v258 = vmul.f32 %v256, %v244
        %v259 = vadd.f32 %v257, 1e-05
        %v260 = vadd.f32 %v258, 1e-05
        %v261 = vrsqrt.pop %v259
        %v262 = vmul.f32 %v261, %v259
        %v263 = vmul.f32 %v262, %v261
        %v264 = vmul.f32 0.5, %v263
        %v265 = vsub.f32 1.5, %v264
        %v266 = vmul.f32 %v261, %v265
        %vm267 = vweird.f32 %v259
        %vm268 = vweird.f32 %v261
        %vm269 = vmor %vm267, %vm268
        %v270 = vsel %vm269, %v261, %v266
        %v271 = vrsqrt.pop %v260
        %v272 = vmul.f32 %v271, %v260
        %v273 = vmul.f32 %v272, %v271
        %v274 = vmul.f32 0.5, %v273
        %v275 = vsub.f32 1.5, %v274
        %v276 = vmul.f32 %v271, %v275
        %vm277 = vweird.f32 %v260
        %vm278 = vweird.f32 %v271
        %vm279 = vmor %vm277, %vm278
        %v280 = vsel %vm279, %v271, %v276
        %v281 = vmul.f32 %v247, %v270
        %v282 = vmul.f32 %v248, %v280
        %v283 = vpack.c.bf16 %v282, %v281
        %v284 = vld [vmem:[%s1] sm:$0xf]
        %v285 = vld [vmem:[%s1 + $0x4] sm:$0xf]
        %v286 = vld [vmem:[%s1 + $0x8] sm:$0xf]
        %v287 = vld [vmem:[%s1 + $0xc] sm:$0xf]
        %v288 = vld [vmem:[%s1 + $0x10] sm:$0xf]
        %v289 = vld [vmem:[%s1 + $0x14] sm:$0xf]
        %v290 = vld [vmem:[%s2] sm:$0x1]
        %v292 = vperm.slane %v290, 0
        %v300 = vunpack.c.l.b16 %v284
        %v301 = vunpack.c.l.b16 %v285
        %v302 = vunpack.c.l.b16 %v286
        %v303 = vunpack.c.l.b16 %v287
        %v304 = vunpack.c.l.b16 %v288
        %v305 = vunpack.c.l.b16 %v289
        %v306 = vpack.c.b16 %v301, %v300
        %v307 = vpack.c.b16 %v303, %v302
        %v308 = vpack.c.b16 %v305, %v304
        %v313 = vsel %vm231, %v283, 0
        %315 = vmatpush.bf16.msra.mxu0 0
        %316 = vmatpush.bf16.msra.mxu0 0
        %317 = vmatpush.bf16.msra.mxu0 0
        %318 = vmatpush.bf16.msra.mxu0 0
        %319 = vmatpush.bf16.msra.mxu0 0
        %320 = vmatpush.bf16.msra.mxu0 %v308
        %321 = vmatpush.bf16.msra.mxu0 %v307
        %322 = vmatpush.bf16.msra.mxu0 %v306
        %323 = vmatmul.bf16.gmra.mxu0 %v313
        %v324 = vpop.f32.mrf.mxu0
        %v325 = vadd.f32 %v292, %v324
        %v326 = vpop.f32.mrf.mxu0
        %v327 = vadd.f32 %v292, %v326
        %328 = vdwg.mxu0
        %329 = vadd.xlane.f32.xlu0 %v325
        %v330 = vpop.xlane.xlu0 %329
        %331 = vadd.xlane.f32.xlu0 %v327
        %v332 = vpop.xlane.xlu0 %331
        %v333 = vrcp.pop 128.0
        %v334 = vmul.f32 128.0, %v333
        %v335 = vsub.f32 1.0, %v334
        %v336 = vmul.f32 %v333, %v335
        %v337 = vadd.f32 %v333, %v336
        %vm338 = vweird.f32 %v333
        %v339 = vsel %vm338, %v333, %v337
        %v340 = vmul.f32 %v330, %v339
        %v341 = vmul.f32 %v332, %v339
        %v342 = vsub.f32 %v325, %v340
        %v343 = vsub.f32 %v327, %v341
        %v344 = vmul.f32 %v342, %v342
        %v345 = vmul.f32 %v343, %v343
        %346 = vadd.xlane.f32.xlu0 %v344
        %v347 = vpop.xlane.xlu0 %346
        %348 = vadd.xlane.f32.xlu0 %v345
        %v349 = vpop.xlane.xlu0 %348
        %v350 = vmul.f32 %v347, %v339
        %v351 = vmul.f32 %v349, %v339
        %v352 = vadd.f32 %v350, 1e-05
        %v353 = vadd.f32 %v351, 1e-05
        %v354 = vrsqrt.pop %v352
        %v355 = vmul.f32 %v354, %v352
        %v356 = vmul.f32 %v355, %v354
        %v357 = vmul.f32 0.5, %v356
        %v358 = vsub.f32 1.5, %v357
        %v359 = vmul.f32 %v354, %v358
        %vm360 = vweird.f32 %v352
        %vm361 = vweird.f32 %v354
        %vm362 = vmor %vm360, %vm361
        %v363 = vsel %vm362, %v354, %v359
        %v364 = vrsqrt.pop %v353
        %v365 = vmul.f32 %v364, %v353
        %v366 = vmul.f32 %v365, %v364
        %v367 = vmul.f32 0.5, %v366
        %v368 = vsub.f32 1.5, %v367
        %v369 = vmul.f32 %v364, %v368
        %vm370 = vweird.f32 %v353
        %vm371 = vweird.f32 %v364
        %vm372 = vmor %vm370, %vm371
        %v373 = vsel %vm372, %v364, %v369
        %v374 = vmul.f32 %v342, %v363
        %v375 = vmul.f32 %v343, %v373
        %v376 = vld [vmem:[%s3] sm:$0x1]
        %v378 = vperm.slane %v376, 0
        %v380 = vmul.f32 %v374, %v378
        %v381 = vmul.f32 %v375, %v378
        %v382 = vld [vmem:[%s4] sm:$0x1]
        %v384 = vperm.slane %v382, 0
        %v386 = vadd.f32 %v380, %v384
        %v387 = vadd.f32 %v381, %v384
        %v388 = vpack.c.bf16 %v386, %v386
        %v389 = vpack.c.bf16 %v387, %v387
        %390 = vst [vmem:[%s218] sm:$0xf] %v388
        %391 = vst [vmem:[%s218 + $0x4] sm:$0xf] %v389
        %s392 = sand.u32 %s137, 1
        %s393 = scalar_lea.sflag [#allocation3], %s392
        %s394 = sand.u32 %s137, 1
        %s395 = smul.addr %s394, 8
        %s396 = scalar_lea.vmem [#allocation2], %s395
        // Predicated region
        $region41: #{patch_embedding.1} parent=39 // pred_check
          %p397 = pneg %p147
        $region42: #{patch_embedding.1} parent=39 // pred_check_branch
          %399 = sbr.rel (%p397) target = $region44
        $region43: #{patch_embedding.1} parent=39 // pred_region
          %s400 = smul.u32 2, %s19
          %402 = vsyncadd %s393, 0
          %s403 = smul.addr %s400, 4
          %s404 = scalar_lea.hbm %s5, %s403
          %s405 = sshll.u32 %s396, 4
          %s406 = int_to_ptr.vmem [resolvable:$true] %s405
          %s407 = sshll.u32 %s404, 4
          %s408 = int_to_ptr.hbm [resolvable:$true] %s407
          %413 = dma.vmem_to_hbm [thread:$0]  %s406, 128, %s408, %s393, 64, 64, 4
        $region44: #{patch_embedding.1} parent=39 // pred_fallthru
          _
      $region40: #{patch_embedding.1} parent=5 // pred_fallthru
        _
      %p414 = scmp.le.s32.totalorder 2, %s14
      // Predicated region
      $region45: #{patch_embedding.1} parent=5 // pred_check
        %p415 = pneg %p414
      $region46: #{patch_embedding.1} parent=5 // pred_check_branch
        %417 = sbr.rel (%p415) target = $region48
      $region47: #{patch_embedding.1} parent=5 // pred_region
        %s418 = ssub.s32 %s14, 2
        // Predicated region
        $region49: #{patch_embedding.1} parent=47 // pred_check
          %p419 = pneg %p153
        $region50: #{patch_embedding.1} parent=47 // pred_check_branch
          %421 = sbr.rel (%p419) target = $region52
        $region51: #{patch_embedding.1} parent=47 // pred_region
          %s422 = sand.u32 %s138, 1
          %s423 = scalar_lea.sflag [#allocation3], %s422
          %s424 = sand.u32 %s138, 1
          %s425 = smul.addr %s424, 8
          %s426 = scalar_lea.vmem [#allocation2], %s425
          %428 = dma.done %s423, 128
        $region52: #{patch_embedding.1} parent=47 // pred_fallthru
          _
      $region48: #{patch_embedding.1} parent=5 // pred_fallthru
        _
    $region6: #{patch_embedding.1} parent=1 // loop_footer
      %s18 = sadd.s32 1, %s14
    $region7: #{patch_embedding.1} parent=1 // loop_footer_branch
      %13 = sbr.rel target = $region3
    $region8: #{patch_embedding.1} parent=1 // loop_exit
      _
    %429 = vsyncpa [#allocation3], 1
    %s430 = scalar_lea.sflag [#allocation3], 1
    %431 = vsyncpa %s430, 1

</llo_original>
